<compile_context>
chip_gen: v6e
topology: v6e:2x2x1
jax: 0.10.0
libtpu: 0.0.40
codegen_flags: <defaults>
</compile_context>

<pallas_src>
import functools
import math

import jax
import jax.numpy as jnp
from jax.experimental import pallas as pl
from jax.experimental.pallas import tpu as pltpu


def _round_up(a, b):
    return (a + b - 1) // b * b


def _chip_info():
    """Best-effort TPU generation / VMEM query with robust fallbacks."""
    kind = ""
    try:
        kind = (jax.devices()[0].device_kind or "").lower()
    except Exception:
        kind = ""
    is_v5 = "v5" in kind
    is_v6 = "v6" in kind
    is_v7 = "v7" in kind
    fast_mxu = is_v6 or is_v7                      # 256-wide MXU generations
    vmem = None
    try:
        vmem = int(pltpu.get_tpu_info().vmem_capacity_bytes)
    except Exception:
        vmem = None
    if not vmem or vmem <= 0:
        vmem = (64 if is_v7 else 128) * 1024 * 1024
    return {
        "fast_mxu": fast_mxu,
        "vmem_bytes": vmem,
        "lane_align": 256 if fast_mxu else 128,    # auto FF-tile alignment
        "num_tc": 2 if is_v7 else 1,               # megacore sharding on v7x
        # HBM-roofline M-tile targets: v5e ~256, v7x ~512 (x2 cores), v6e ~1024.
        "tm_target": 1024 if is_v6 else (512 if is_v7 else 256),
        "tf_target": 256 if is_v7 else 512,        # smaller VMEM on v7x
    }


def _mlp_kernel(x_ref, w0_ref, b0_ref, w1_ref, b1_ref, o_ref, acc_ref, *,
                tf, resident_weights, approximate_gelu, gelu_dtype):
    # x_ref : (TM, Hp)               token tile (matmul dtype)
    # w0_ref: (Hp, TF) or (Hp, Fp)   fc0 weight (FF tile / resident)
    # b0_ref: (1,  TF) or (1,  Fp)   fc0 bias (f32)
    # w1_ref: (TF, Hp) or (Fp, Hp)   fc1 weight (FF tile / resident)
    # b1_ref: (1, Hp)                fc1 bias (f32)
    # o_ref : (TM, Hp)               output tile (resident across the FF axis)
    # acc_ref:(TM, Hp)               f32 accumulator scratch
    f = pl.program_id(1)

    @pl.when(f == 0)
    def _():
        acc_ref[...] = jnp.zeros_like(acc_ref)

    if resident_weights:
        off = pl.multiple_of(f * tf, tf)
        w0_blk = w0_ref[:, pl.ds(off, tf)]
        b0_blk = b0_ref[:, pl.ds(off, tf)]
        w1_blk = w1_ref[pl.ds(off, tf), :]
    else:
        w0_blk = w0_ref[...]
        b0_blk = b0_ref[...]
        w1_blk = w1_ref[...]

    # fc0 on this FF tile (MXU, f32 accumulation) + bias.
    h = jnp.dot(x_ref[...], w0_blk, preferred_element_type=jnp.float32) + b0_blk

    if approximate_gelu:
        # tanh approximation routes the transcendental through the EUP slot,
        # which sits idle under the matmuls on the fast-MXU chips.
        h = h.astype(gelu_dtype)
        c = math.sqrt(2.0 / math.pi)
        h = 0.5 * h * (1.0 + jnp.tanh(c * (h + 0.044715 * (h * h * h))))
    else:
        # Exact erf GELU (PyTorch nn.GELU default), kept in f32.
        h = 0.5 * h * (1.0 + jax.lax.erf(h * (1.0 / math.sqrt(2.0))))

    # fc1 partial product for this FF tile, accumulated in f32.
    acc_ref[...] += jnp.dot(h.astype(w1_blk.dtype), w1_blk,
                            preferred_element_type=jnp.float32)

    @pl.when(f == pl.num_programs(1) - 1)
    def _():
        o_ref[...] = (acc_ref[...] + b1_ref[...]).astype(o_ref.dtype)


def mlp_block(x, w0, b0, w1, b1, *, tile_m=None, tile_f=None,
              matmul_dtype=jnp.bfloat16, approximate_gelu=None,
              weights_resident=None):
    """Fused Linear -> GELU -> Linear (PyTorch MlpBlock.forward).

    x:  (..., hidden)
    w0: (hidden, ff)   (transposed PyTorch fc0.weight)   b0: (ff,)
    w1: (ff, hidden)   (transposed PyTorch fc1.weight)   b1: (hidden,)

    tile_m / tile_f:       None -> roofline-based per-chip auto selection.
    approximate_gelu:      None -> tanh on v6e/v7x, exact erf elsewhere.
    weights_resident:      None -> auto (resident iff weights fit VMEM budget).
    """
    info = _chip_info()
    orig_shape = x.shape
    hidden = orig_shape[-1]
    ff = w0.shape[1]
    out_dtype = x.dtype

    x2d = x.reshape(-1, hidden)
    m = x2d.shape[0]

    xd = jnp.dtype(matmul_dtype)
    ib = xd.itemsize
    ob = jnp.dtype(out_dtype).itemsize
    sublane = max(8, 32 // ib)                 # 8 f32, 16 bf16, 32 int8/fp8
    vmem_cap = int(info["vmem_bytes"] * 0.82)  # headroom for compiler scratch

    # Activation configuration (tanh/EUP + low-precision elementwise on v6e/v7x).
    if approximate_gelu is None:
        approximate_gelu = info["fast_mxu"]
    low_precision_act = approximate_gelu and info["fast_mxu"] and ib < 4
    gelu_dtype = matmul_dtype if low_precision_act else jnp.float32

    # ---- lane-dense padded sizes and tile selection --------------------------
    hp = _round_up(hidden, 128)                # lane axis of x / out / w1

    if tile_f is None:                         # auto: balanced, MXU-width aligned
        la = info["lane_align"]
        fp0 = _round_up(ff, la)
        nft = pl.cdiv(fp0, info["tf_target"])
        tf = _round_up(pl.cdiv(fp0, nft), la)
    else:
        tf = min(_round_up(tile_f, 128), _round_up(ff, 128))

    mp0 = _round_up(m, sublane)
    if tile_m is None:                         # auto: roofline target, balanced
        nmt = pl.cdiv(mp0, info["tm_target"])
        tm = _round_up(pl.cdiv(mp0, nmt), sublane)
        # Megacore (v7x): make sure both TensorCores get an M tile.
        if info["num_tc"] > 1 and nmt < info["num_tc"] and mp0 >= 2 * sublane:
            tm = _round_up(pl.cdiv(mp0, info["num_tc"]), sublane)
    else:
        tm = min(_round_up(tile_m, sublane), mp0)

    # ---- VMEM footprint models (double-buffered pipeline blocks + f32 acc) ---
    def _stream_bytes(tm_, tf_):
        return (2 * (tm_ * hp * ib            # x tile
                     + hp * tf_ * ib          # W0 FF tile
                     + tf_ * 4                # b0 FF tile
                     + tf_ * hp * ib          # W1 FF tile
                     + hp * 4                 # b1
                     + tm_ * hp * ob)         # out tile
                + tm_ * hp * 4)               # f32 accumulator scratch

    def _resident_bytes(tm_, fp_):
        return (2 * (tm_ * hp * ib + tm_ * hp * ob + hp * 4)
                + 2 * (hp * fp_ * ib + fp_ * hp * ib + fp_ * 4)  # W0/W1/b0 resident
                + tm_ * hp * 4)

    fp = _round_up(ff, tf)
    f_tiles = fp // tf

    if weights_resident is None:
        use_resident = f_tiles > 1 and _resident_bytes(tm, fp) <= vmem_cap
    else:
        use_resident = bool(weights_resident)

    if use_resident:
        while _resident_bytes(tm, fp) > vmem_cap and tm > sublane:
            tm = max(sublane, _round_up(tm // 2, sublane))
        if weights_resident is None and _resident_bytes(tm, fp) > vmem_cap:
            use_resident = False
    if not use_resident:
        while _stream_bytes(tm, tf) > vmem_cap and (tm > sublane or tf > 128):
            if tm >= tf and tm > sublane:
                tm = max(sublane, _round_up(tm // 2, sublane))
            elif tf > 128:
                tf = max(128, _round_up(tf // 2, 128))
            else:
                tm = max(sublane, _round_up(tm // 2, sublane))
        fp = _round_up(ff, tf)
        f_tiles = fp // tf

    m_tiles = pl.cdiv(mp0, tm)
    mp = m_tiles * tm

    needed = _resident_bytes(tm, fp) if use_resident else _stream_bytes(tm, tf)
    vmem_limit = min(vmem_cap, max(32 * 1024 * 1024, int(needed * 1.25)))

    # ---- pad / cast operands only when actually required ---------------------
    # (zero padding is exact for this op: GELU(0) * 0 contributes nothing)
    def _prep(arr, shape, dtype, slices):
        if arr.shape == shape:
            return arr if arr.dtype == jnp.dtype(dtype) else arr.astype(dtype)
        return jnp.zeros(shape, dtype).at[slices].set(arr.astype(dtype))

    xp = _prep(x2d, (mp, hp), matmul_dtype, (slice(0, m), slice(0, hidden)))
    w0p = _prep(w0, (hp, fp), matmul_dtype, (slice(0, hidden), slice(0, ff)))
    w1p = _prep(w1, (fp, hp), matmul_dtype, (slice(0, ff), slice(0, hidden)))
    b0p = _prep(b0.reshape(1, ff), (1, fp), jnp.float32,
                (slice(0, 1), slice(0, ff)))
    b1p = _prep(b1.reshape(1, hidden), (1, hp), jnp.float32,
                (slice(0, 1), slice(0, hidden)))
    # NOTE: for repeated calls, jit this wrapper (XLA fuses/hoists the weight
    # pad/cast) or pre-pad the weights once outside the per-call path.

    # ---- BlockSpecs -----------------------------------------------------------
    if use_resident:
        # Constant index_map -> weights fetched ONCE, stay resident in VMEM.
        w0_spec = pl.BlockSpec((hp, fp), lambda i, f: (0, 0))
        b0_spec = pl.BlockSpec((1, fp), lambda i, f: (0, 0))
        w1_spec = pl.BlockSpec((fp, hp), lambda i, f: (0, 0))
    else:
        w0_spec = pl.BlockSpec((hp, tf), lambda i, f: (0, f))
        b0_spec = pl.BlockSpec((1, tf), lambda i, f: (0, f))
        w1_spec = pl.BlockSpec((tf, hp), lambda i, f: (f, 0))

    kernel = functools.partial(
        _mlp_kernel, tf=tf, resident_weights=use_resident,
        approximate_gelu=approximate_gelu, gelu_dtype=gelu_dtype)

    out = pl.pallas_call(
        kernel,
        out_shape=jax.ShapeDtypeStruct((mp, hp), out_dtype),
        grid_spec=pltpu.PrefetchScalarGridSpec(
            num_scalar_prefetch=0,
            grid=(m_tiles, f_tiles),                          # FF reduction last
            in_specs=[
                pl.BlockSpec((tm, hp), lambda i, f: (i, 0)),  # x token tile
                w0_spec, b0_spec, w1_spec,
                pl.BlockSpec((1, hp), lambda i, f: (0, 0)),   # b1 (constant)
            ],
            out_specs=pl.BlockSpec((tm, hp), lambda i, f: (i, 0)),
            scratch_shapes=[pltpu.VMEM((tm, hp), jnp.float32)],
        ),
        compiler_params=pltpu.CompilerParams(
            dimension_semantics=("parallel", "arbitrary"),
            vmem_limit_bytes=vmem_limit,
        ),
    )(xp, w0p, b0p, w1p, b1p)

    if mp != m or hp != hidden:
        out = out[:m, :hidden]
    return out.reshape(orig_shape)


def reference_mlp(x, w0, b0, w1, b1):
    h = x @ w0 + b0
    h = 0.5 * h * (1.0 + jax.lax.erf(h / jnp.sqrt(jnp.float32(2.0))))
    return h @ w1 + b1


if __name__ == "__main__":
    # Small shapes consistent with the module.
    batch, seq, hidden_dim, ff_dim = 2, 8, 32, 192

    key = jax.random.PRNGKey(0)
    kx, kw0, kb0, kw1, kb1 = jax.random.split(key, 5)

    x = jax.random.normal(kx, (batch, seq, hidden_dim), dtype=jnp.float32)

    # Deterministic parameter init (PyTorch nn.Linear weight is (out, in);
    # we store the transposed (in, out) layout used by the kernel).
    bound0 = 1.0 / math.sqrt(hidden_dim)
    bound1 = 1.0 / math.sqrt(ff_dim)
    w0 = jax.random.uniform(kw0, (hidden_dim, ff_dim), minval=-bound0,
                            maxval=bound0, dtype=jnp.float32)
    b0 = jax.random.uniform(kb0, (ff_dim,), minval=-bound0, maxval=bound0,
                            dtype=jnp.float32)
    w1 = jax.random.uniform(kw1, (ff_dim, hidden_dim), minval=-bound1,
                            maxval=bound1, dtype=jnp.float32)
    b1 = jax.random.uniform(kb1, (hidden_dim,), minval=-bound1, maxval=bound1,
                            dtype=jnp.float32)

    ref = reference_mlp(x.reshape(-1, hidden_dim), w0, b0, w1, b1).reshape(x.shape)

    # 1) Exact-erf, f32 operands, small explicit tiles, streaming weights:
    #    exercises the (M, FF) grid, accumulator, padding, and tiled-weight path.
    out1 = mlp_block(x, w0, b0, w1, b1, tile_m=8, tile_f=128,
                     matmul_dtype=jnp.float32, approximate_gelu=False,
                     weights_resident=False)
    out1 = jax.block_until_ready(out1)
    assert out1.shape == x.shape
    assert jnp.allclose(out1, ref, atol=1e-5, rtol=1e-5)

    # 2) Same but with the weight-resident path forced (full-extent weight
    #    blocks, constant index_map, in-kernel FF slicing).
    out2 = mlp_block(x, w0, b0, w1, b1, tile_m=8, tile_f=128,
                     matmul_dtype=jnp.float32, approximate_gelu=False,
                     weights_resident=True)
    out2 = jax.block_until_ready(out2)
    assert jnp.allclose(out2, ref, atol=1e-5, rtol=1e-5)

    # 3) Default fast path: chip-tuned tiles, bf16 MXU operands, auto GELU
    #    (tanh/EUP on v6e/v7x, exact erf on v5e), f32 accumulation.
    out3 = mlp_block(x, w0, b0, w1, b1)
    out3 = jax.block_until_ready(out3)
    assert out3.shape == x.shape
    assert jnp.allclose(out3, ref, atol=5e-2, rtol=5e-2)

    # 4) Explicit tanh-approximate GELU with f32 operands.
    out4 = mlp_block(x, w0, b0, w1, b1, matmul_dtype=jnp.float32,
                     approximate_gelu=True)
    out4 = jax.block_until_ready(out4)
    assert jnp.allclose(out4, ref, atol=1e-2, rtol=1e-2)

    print("KERNEL_OK")
</pallas_src>

<mosaic_0001>
module attributes {stable_mosaic.version = 11 : i64} {
  func.func @_mlp_kernel(%arg0: i32, %arg1: i32, %arg2: memref<8x128xf32, #tpu.memory_space<vmem>>, %arg3: memref<128x128xf32, #tpu.memory_space<vmem>>, %arg4: memref<1x128xf32, #tpu.memory_space<vmem>>, %arg5: memref<128x128xf32, #tpu.memory_space<vmem>>, %arg6: memref<1x128xf32, #tpu.memory_space<vmem>>, %arg7: memref<8x128xf32, #tpu.memory_space<vmem>>, %arg8: memref<8x128xf32, #tpu.memory_space<vmem>>) attributes {dimension_semantics = [#tpu.dimension_semantics<parallel>, #tpu.dimension_semantics<arbitrary>], iteration_bounds = array<i64: 2, 2>, scalar_prefetch = 0 : i64, scratch_operands = 1 : i64, tpu.core_type = #tpu.core_type<tc>, window_params = [{transform_indices = @transform_0, window_bounds = array<i64: 8, 128>}, {transform_indices = @transform_1, window_bounds = array<i64: 128, 128>}, {transform_indices = @transform_2, window_bounds = array<i64: 1, 128>}, {transform_indices = @transform_3, window_bounds = array<i64: 128, 128>}, {pipeline_mode = #tpu.pipeline_mode<synchronous>, transform_indices = @transform_4, window_bounds = array<i64: 1, 128>}, {transform_indices = @transform_5, window_bounds = array<i64: 8, 128>}]} {
    %c0_i32 = arith.constant 0 : i32
    %0 = arith.cmpi eq, %arg1, %c0_i32 : i32
    %1 = arith.extui %0 : i1 to i32
    %c0_i32_0 = arith.constant 0 : i32
    %2 = arith.cmpi ne, %1, %c0_i32_0 : i32
    scf.if %2 {
      %cst_17 = arith.constant 0.000000e+00 : f32
      %25 = vector.broadcast %cst_17 : f32 to vector<8x128xf32>
      %c0_18 = arith.constant 0 : index
      %c0_19 = arith.constant 0 : index
      %26 = vector.load %arg8[%c0_18, %c0_19] : memref<8x128xf32, #tpu.memory_space<vmem>>, vector<8x128xf32>
      tpu.vector_store %arg8[%c0_18, %c0_19], %25 {strides = array<i32>} : memref<8x128xf32, #tpu.memory_space<vmem>>, vector<8x128xf32>,
    } else {
    }
    %c0 = arith.constant 0 : index
    %c0_1 = arith.constant 0 : index
    %3 = vector.load %arg3[%c0, %c0_1] : memref<128x128xf32, #tpu.memory_space<vmem>>, vector<128x128xf32>
    %c0_2 = arith.constant 0 : index
    %c0_3 = arith.constant 0 : index
    %4 = vector.load %arg4[%c0_2, %c0_3] : memref<1x128xf32, #tpu.memory_space<vmem>>, vector<1x128xf32>
    %c0_4 = arith.constant 0 : index
    %c0_5 = arith.constant 0 : index
    %5 = vector.load %arg5[%c0_4, %c0_5] : memref<128x128xf32, #tpu.memory_space<vmem>>, vector<128x128xf32>
    %c0_6 = arith.constant 0 : index
    %c0_7 = arith.constant 0 : index
    %6 = vector.load %arg2[%c0_6, %c0_7] : memref<8x128xf32, #tpu.memory_space<vmem>>, vector<8x128xf32>
    %cst = arith.constant dense<0.000000e+00> : vector<8x128xf32>
    %7 = tpu.matmul %6, %3, %cst {dimension_numbers = #tpu.dot_dimension_numbers<[1], [0], [0], [1], [0, 0, 1, 1], [], []>} : vector<8x128xf32>, vector<128x128xf32>, vector<8x128xf32> -> vector<8x128xf32>
    %8 = vector.broadcast %4 : vector<1x128xf32> to vector<8x128xf32>
    %9 = arith.addf %7, %8 : vector<8x128xf32>
    %cst_8 = arith.constant 5.000000e-01 : f32
    %10 = vector.broadcast %cst_8 : f32 to vector<8x128xf32>
    %11 = arith.mulf %10, %9 : vector<8x128xf32>
    %cst_9 = arith.constant 0.707106769 : f32
    %12 = vector.broadcast %cst_9 : f32 to vector<8x128xf32>
    %13 = arith.mulf %9, %12 : vector<8x128xf32>
    %14 = math.erf %13 : vector<8x128xf32>
    %cst_10 = arith.constant 1.000000e+00 : f32
    %15 = vector.broadcast %cst_10 : f32 to vector<8x128xf32>
    %16 = arith.addf %15, %14 : vector<8x128xf32>
    %17 = arith.mulf %11, %16 : vector<8x128xf32>
    %c0_11 = arith.constant 0 : index
    %c0_12 = arith.constant 0 : index
    %18 = vector.load %arg8[%c0_11, %c0_12] : memref<8x128xf32, #tpu.memory_space<vmem>>, vector<8x128xf32>
    %cst_13 = arith.constant dense<0.000000e+00> : vector<8x128xf32>
    %19 = tpu.matmul %17, %5, %cst_13 {dimension_numbers = #tpu.dot_dimension_numbers<[1], [0], [0], [1], [0, 0, 1, 1], [], []>} : vector<8x128xf32>, vector<128x128xf32>, vector<8x128xf32> -> vector<8x128xf32>
    %20 = arith.addf %18, %19 : vector<8x128xf32>
    %c0_14 = arith.constant 0 : index
    %c0_15 = arith.constant 0 : index
    %21 = vector.load %arg8[%c0_14, %c0_15] : memref<8x128xf32, #tpu.memory_space<vmem>>, vector<8x128xf32>
    tpu.vector_store %arg8[%c0_14, %c0_15], %20 {strides = array<i32>} : memref<8x128xf32, #tpu.memory_space<vmem>>, vector<8x128xf32>,
    %c1_i32 = arith.constant 1 : i32
    %22 = arith.cmpi eq, %arg1, %c1_i32 : i32
    %23 = arith.extui %22 : i1 to i32
    %c0_i32_16 = arith.constant 0 : i32
    %24 = arith.cmpi ne, %23, %c0_i32_16 : i32
    scf.if %24 {
      %c0_17 = arith.constant 0 : index
      %c0_18 = arith.constant 0 : index
      %25 = vector.load %arg8[%c0_17, %c0_18] : memref<8x128xf32, #tpu.memory_space<vmem>>, vector<8x128xf32>
      %c0_19 = arith.constant 0 : index
      %c0_20 = arith.constant 0 : index
      %26 = vector.load %arg6[%c0_19, %c0_20] : memref<1x128xf32, #tpu.memory_space<vmem>>, vector<1x128xf32>
      %27 = vector.broadcast %26 : vector<1x128xf32> to vector<8x128xf32>
      %28 = arith.addf %25, %27 : vector<8x128xf32>
      %c0_21 = arith.constant 0 : index
      %c0_22 = arith.constant 0 : index
      %29 = vector.load %arg7[%c0_21, %c0_22] : memref<8x128xf32, #tpu.memory_space<vmem>>, vector<8x128xf32>
      tpu.vector_store %arg7[%c0_21, %c0_22], %28 {strides = array<i32>} : memref<8x128xf32, #tpu.memory_space<vmem>>, vector<8x128xf32>,
    } else {
    }
    return
  }
  func.func @transform_0(%arg0: i32, %arg1: i32) -> (i32, i32) {
    %c0_i32 = arith.constant 0 : i32
    %c0_i32_0 = arith.constant 0 : i32
    return %arg0, %c0_i32 : i32, i32
  }
  func.func @transform_1(%arg0: i32, %arg1: i32) -> (i32, i32) {
    %c0_i32 = arith.constant 0 : i32
    %c0_i32_0 = arith.constant 0 : i32
    return %c0_i32, %arg1 : i32, i32
  }
  func.func @transform_2(%arg0: i32, %arg1: i32) -> (i32, i32) {
    %c0_i32 = arith.constant 0 : i32
    %c0_i32_0 = arith.constant 0 : i32
    return %c0_i32, %arg1 : i32, i32
  }
  func.func @transform_3(%arg0: i32, %arg1: i32) -> (i32, i32) {
    %c0_i32 = arith.constant 0 : i32
    %c0_i32_0 = arith.constant 0 : i32
    return %arg1, %c0_i32 : i32, i32
  }
  func.func @transform_4(%arg0: i32, %arg1: i32) -> (i32, i32) {
    %c0_i32 = arith.constant 0 : i32
    %c0_i32_0 = arith.constant 0 : i32
    %c0_i32_1 = arith.constant 0 : i32
    return %c0_i32, %c0_i32_0 : i32, i32
  }
  func.func @transform_5(%arg0: i32, %arg1: i32) -> (i32, i32) {
    %c0_i32 = arith.constant 0 : i32
    %c0_i32_0 = arith.constant 0 : i32
    return %arg0, %c0_i32 : i32, i32
  }
}

</mosaic_0001>

<llo_original>
// kernel: tpu_custom_call.1
$region0: #{tpu_custom_call.1}
  #allocation0 [shape = 'u32[]', space=smem, size = 0x4, offset = 0x4, fixed_abs, tag = 'smem constant byte address 0x4 - core index']
  #allocation1 [shape = 'u32[144,128]{1,0:T(1,128)}', space=vmem, size = 0x12000, scoped, tag = 'internal scratch']
  #allocation2 [shape = 'f32[8,128]{1,0:T(8,128)}', space=vmem, size = 0x1000, scoped, tag = 'scratch operand']
  %s0 = inlined_call_operand.hbm [shape: f32[16,128], index: 0, kind: input, shape index: {}]
  %s1 = inlined_call_operand.hbm [shape: f32[128,256], index: 1, kind: input, shape index: {}]
  %s2 = inlined_call_operand.vmem [shape: f32[1,256], index: 2, kind: input, shape index: {}]
  %s3 = inlined_call_operand.hbm [shape: f32[256,128], index: 3, kind: input, shape index: {}]
  %s4 = inlined_call_operand.vmem [shape: f32[1,128], index: 4, kind: input, shape index: {}]
  %s5 = inlined_call_operand.hbm [shape: f32[16,128], index: 5, kind: output, shape index: {}]
  %s6 = sld [smem:[#allocation0]]
  $region73: #{tpu_custom_call.1} parent=0
    _
  %s8 = ssub.s32 1, %s6
  %s9 = scalar_select 0, %s8, %s6
  $region1: #{tpu_custom_call.1} parent=0
    #allocation3 [shape = 'u8[8192]{0}', space=vmem, size = 0x2000, scoped, tag = 'input window, operand 0']
    #allocation4 [shape = 's32[2]{0}', space=sflag, size = 0x8, scoped, tag = 'scoped memory for tpu_custom_call.1']
    #allocation5 [shape = 's32[2]{0}', space=sflag, size = 0x8, scoped, tag = 'scoped memory for tpu_custom_call.1']
    #allocation6 [shape = 'u8[131072]{0}', space=vmem, size = 0x20000, scoped, tag = 'input window, operand 1']
    #allocation7 [shape = 's32[2]{0}', space=sflag, size = 0x8, scoped, tag = 'scoped memory for tpu_custom_call.1']
    #allocation8 [shape = 'u8[131072]{0}', space=vmem, size = 0x20000, scoped, tag = 'input window, operand 3']
    #allocation9 [shape = 'u8[8192]{0}', space=vmem, size = 0x2000, scoped, tag = 'output window, operand 0']
    %10 = vsyncpa [#allocation4], 0
    %s11 = scalar_lea.sflag [#allocation4], 1
    %12 = vsyncpa %s11, 0
    %13 = vsyncpa [#allocation7], 0
    %s14 = scalar_lea.sflag [#allocation7], 1
    %15 = vsyncpa %s14, 0
    %16 = vsyncpa [#allocation5], 0
    %s17 = scalar_lea.sflag [#allocation5], 1
    %18 = vsyncpa %s17, 0
    loop: start=0, step=1, limit=6
    $region2: #{tpu_custom_call.1} parent=1 // loop_pre_header
      _
    $region3: #{tpu_custom_call.1} parent=1 // loop_header
      %s20 = sphi 0, %s24
      %p21 = scmp.ge.s32.totalorder %s20, 6
      %s27 = sphi 0, %s39
      %s28 = sphi 0, %s35
      %s29 = sphi 0, %s27
      %s30 = sphi 0, %s28
      %s31 = sphi 0, %s29
      %s32 = sphi 0, %s30
      %s42 = sphi 0, %s44
      %s45 = sphi 0, %s42
      %s46 = sphi 0, %s45
      %s62 = sphi 0, %s46
      %s68 = sphi 0, %s70
      %s71 = sphi 0, %s68
      %s72 = sphi 0, %s71
      %s88 = sphi 0, %s72
      %s94 = sphi 0, %s96
      %s97 = sphi 0, %s94
      %s98 = sphi 0, %s97
      %s114 = sphi 0, %s98
      %s120 = sphi 0, %s122
      %s123 = sphi 0, %s120
      %s124 = sphi 0, %s123
      %s140 = sphi 0, %s124
      %s144 = sphi 0, %s144
      %s146 = sphi 0, %s144
      %s147 = sphi 0, %s146
      %s161 = sphi 0, %s147
      %s167 = sphi 0, %s169
      %s170 = sphi 0, %s167
      %s171 = sphi 0, %s170
      %s187 = sphi 0, %s171
    $region4: #{tpu_custom_call.1} parent=1 // loop_header_branch
      %23 = sbr.rel (%p21) target = $region8
    $region5: #{tpu_custom_call.1} parent=1 // loop_body
      %s25 = ssub.s32 %s20, 1
      %s26 = ssub.s32 %s20, 2
      %s33 = sadd.s32 1, %s28
      %p34 = scmp.ge.s32.totalorder %s33, 2
      %s35 = scalar_select %p34, 0, %s33
      %s36 = sadd.s32 1, %s27
      %s37 = scalar_select %p34, %s36, %s27
      %p38 = scmp.ge.s32.totalorder %s37, 2
      %s39 = scalar_select %p38, 0, %s37
      %s40 = ssub.s32 %s27, %s39
      %p41 = scmp.eq.s32.totalorder %s40, 0
      %s43 = sadd.s32 %s42, 1
      %s44 = scalar_select %p41, %s42, %s43
      %p47 = pneg %p41
      %p48 = scmp.eq.s32.totalorder %s20, 3
      %p49 = por %p47, %p48
      %p50 = scmp.ne.s32.totalorder %s42, %s45
      %p51 = scmp.eq.s32.totalorder %s20, 0
      %p52 = por %p50, %p51
      %p53 = scmp.ne.s32.totalorder %s42, %s45
      %p54 = scmp.eq.s32.totalorder %s25, 3
      %p55 = por %p53, %p54
      %p56 = scmp.ne.s32.totalorder %s45, %s46
      %p57 = scmp.eq.s32.totalorder %s25, 0
      %p58 = por %p56, %p57
      %p59 = scmp.ne.s32.totalorder %s45, %s46
      %p60 = scmp.eq.s32.totalorder %s26, 3
      %p61 = por %p59, %p60
      %p63 = scmp.ne.s32.totalorder %s46, %s62
      %p64 = scmp.eq.s32.totalorder %s26, 0
      %p65 = por %p63, %p64
      %s66 = ssub.s32 %s28, %s35
      %p67 = scmp.eq.s32.totalorder %s66, 0
      %s69 = sadd.s32 %s68, 1
      %s70 = scalar_select %p67, %s68, %s69
      %p73 = pneg %p67
      %p74 = scmp.eq.s32.totalorder %s20, 3
      %p75 = por %p73, %p74
      %p76 = scmp.ne.s32.totalorder %s68, %s71
      %p77 = scmp.eq.s32.totalorder %s20, 0
      %p78 = por %p76, %p77
      %p79 = scmp.ne.s32.totalorder %s68, %s71
      %p80 = scmp.eq.s32.totalorder %s25, 3
      %p81 = por %p79, %p80
      %p82 = scmp.ne.s32.totalorder %s71, %s72
      %p83 = scmp.eq.s32.totalorder %s25, 0
      %p84 = por %p82, %p83
      %p85 = scmp.ne.s32.totalorder %s71, %s72
      %p86 = scmp.eq.s32.totalorder %s26, 3
      %p87 = por %p85, %p86
      %p89 = scmp.ne.s32.totalorder %s72, %s88
      %p90 = scmp.eq.s32.totalorder %s26, 0
      %p91 = por %p89, %p90
      %s92 = ssub.s32 %s28, %s35
      %p93 = scmp.eq.s32.totalorder %s92, 0
      %s95 = sadd.s32 %s94, 1
      %s96 = scalar_select %p93, %s94, %s95
      %p99 = pneg %p93
      %p100 = scmp.eq.s32.totalorder %s20, 3
      %p101 = por %p99, %p100
      %p102 = scmp.ne.s32.totalorder %s94, %s97
      %p103 = scmp.eq.s32.totalorder %s20, 0
      %p104 = por %p102, %p103
      %p105 = scmp.ne.s32.totalorder %s94, %s97
      %p106 = scmp.eq.s32.totalorder %s25, 3
      %p107 = por %p105, %p106
      %p108 = scmp.ne.s32.totalorder %s97, %s98
      %p109 = scmp.eq.s32.totalorder %s25, 0
      %p110 = por %p108, %p109
      %p111 = scmp.ne.s32.totalorder %s97, %s98
      %p112 = scmp.eq.s32.totalorder %s26, 3
      %p113 = por %p111, %p112
      %p115 = scmp.ne.s32.totalorder %s98, %s114
      %p116 = scmp.eq.s32.totalorder %s26, 0
      %p117 = por %p115, %p116
      %s118 = ssub.s32 %s28, %s35
      %p119 = scmp.eq.s32.totalorder %s118, 0
      %s121 = sadd.s32 %s120, 1
      %s122 = scalar_select %p119, %s120, %s121
      %p125 = pneg %p119
      %p126 = scmp.eq.s32.totalorder %s20, 3
      %p127 = por %p125, %p126
      %p128 = scmp.ne.s32.totalorder %s120, %s123
      %p129 = scmp.eq.s32.totalorder %s20, 0
      %p130 = por %p128, %p129
      %p131 = scmp.ne.s32.totalorder %s120, %s123
      %p132 = scmp.eq.s32.totalorder %s25, 3
      %p133 = por %p131, %p132
      %p134 = scmp.ne.s32.totalorder %s123, %s124
      %p135 = scmp.eq.s32.totalorder %s25, 0
      %p136 = por %p134, %p135
      %p137 = scmp.ne.s32.totalorder %s123, %s124
      %p138 = scmp.eq.s32.totalorder %s26, 3
      %p139 = por %p137, %p138
      %p141 = scmp.ne.s32.totalorder %s124, %s140
      %p142 = scmp.eq.s32.totalorder %s26, 0
      %p143 = por %p141, %p142
      %s145 = sadd.s32 %s144, 1
      %p148 = scmp.eq.s32.totalorder %s20, 3
      %p149 = scmp.ne.s32.totalorder %s144, %s146
      %p150 = scmp.eq.s32.totalorder %s20, 0
      %p151 = por %p149, %p150
      %p152 = scmp.ne.s32.totalorder %s144, %s146
      %p153 = scmp.eq.s32.totalorder %s25, 3
      %p154 = por %p152, %p153
      %p155 = scmp.ne.s32.totalorder %s146, %s147
      %p156 = scmp.eq.s32.totalorder %s25, 0
      %p157 = por %p155, %p156
      %p158 = scmp.ne.s32.totalorder %s146, %s147
      %p159 = scmp.eq.s32.totalorder %s26, 3
      %p160 = por %p158, %p159
      %p162 = scmp.ne.s32.totalorder %s147, %s161
      %p163 = scmp.eq.s32.totalorder %s26, 0
      %p164 = por %p162, %p163
      %s165 = ssub.s32 %s27, %s39
      %p166 = scmp.eq.s32.totalorder %s165, 0
      %s168 = sadd.s32 %s167, 1
      %s169 = scalar_select %p166, %s167, %s168
      %p172 = pneg %p166
      %p173 = scmp.eq.s32.totalorder %s20, 3
      %p174 = por %p172, %p173
      %p175 = scmp.ne.s32.totalorder %s167, %s170
      %p176 = scmp.eq.s32.totalorder %s20, 0
      %p177 = por %p175, %p176
      %p178 = scmp.ne.s32.totalorder %s167, %s170
      %p179 = scmp.eq.s32.totalorder %s25, 3
      %p180 = por %p178, %p179
      %p181 = scmp.ne.s32.totalorder %s170, %s171
      %p182 = scmp.eq.s32.totalorder %s25, 0
      %p183 = por %p181, %p182
      %p184 = scmp.ne.s32.totalorder %s170, %s171
      %p185 = scmp.eq.s32.totalorder %s26, 3
      %p186 = por %p184, %p185
      %p188 = scmp.ne.s32.totalorder %s171, %s187
      %p189 = scmp.eq.s32.totalorder %s26, 0
      %p190 = por %p188, %p189
      %p191 = scmp.le.s32.totalorder 1, %s20
      %p192 = scmp.lt.s32.totalorder %s20, 5
      %p193 = pnand %p191, %p192
      %p194 = pneg %p193
      // Predicated region
      $region9: #{tpu_custom_call.1} parent=5 // pred_check
        _
      $region10: #{tpu_custom_call.1} parent=5 // pred_check_branch
        %196 = sbr.rel (%p193) target = $region12
      $region11: #{tpu_custom_call.1} parent=5 // pred_region
        %s197 = ssub.s32 %s20, 1
        // Predicated region
        $region13: #{tpu_custom_call.1} parent=11 // pred_check
          %p198 = pneg %p157
        $region14: #{tpu_custom_call.1} parent=11 // pred_check_branch
          %200 = sbr.rel (%p198) target = $region16
        $region15: #{tpu_custom_call.1} parent=11 // pred_region
          _
        $region16: #{tpu_custom_call.1} parent=11 // pred_fallthru
          _
      $region12: #{tpu_custom_call.1} parent=5 // pred_fallthru
        _
      %p201 = scmp.lt.s32.totalorder %s20, 4
      // Predicated region
      $region17: #{tpu_custom_call.1} parent=5 // pred_check
        %p202 = pneg %p201
      $region18: #{tpu_custom_call.1} parent=5 // pred_check_branch
        %204 = sbr.rel (%p202) target = $region20
      $region19: #{tpu_custom_call.1} parent=5 // pred_region
        // Predicated region
        $region21: #{tpu_custom_call.1} parent=19 // pred_check
          %p205 = pneg %p52
        $region22: #{tpu_custom_call.1} parent=19 // pred_check_branch
          %207 = sbr.rel (%p205) target = $region24
        $region23: #{tpu_custom_call.1} parent=19 // pred_region
          %s208 = sand.u32 %s42, 1
          %s209 = scalar_lea.sflag [#allocation4], %s208
          %s210 = sand.u32 %s42, 1
          %s211 = smul.addr %s210, 8
          %s212 = scalar_lea.vmem [#allocation3], %s211
          %s214 = ssub.s32 128, 128
          %215 = vsyncadd %s209, %s214
          %s216 = smul.addr %s27, 128
          %s217 = scalar_lea.hbm %s0, %s216
          %s219 = sshll.u32 %s212, 4
          %s220 = int_to_ptr.vmem [resolvable:$true] %s219
          %222 = dma.hbm_to_vmem [thread:$0]  %s217, 128, %s220, %s209
        $region24: #{tpu_custom_call.1} parent=19 // pred_fallthru
          _
        // Predicated region
        $region25: #{tpu_custom_call.1} parent=19 // pred_check
          %p223 = pneg %p78
        $region26: #{tpu_custom_call.1} parent=19 // pred_check_branch
          %225 = sbr.rel (%p223) target = $region28
        $region27: #{tpu_custom_call.1} parent=19 // pred_region
          %s226 = sand.u32 %s20, 1
          %s227 = scalar_lea.sflag [#allocation7], %s226
          %s228 = sand.u32 %s68, 1
          %s229 = smul.addr %s228, 128
          %s230 = scalar_lea.vmem [#allocation6], %s229
          %s232 = ssub.s32 2048, 2048
          %233 = vsyncadd %s227, %s232
          %s234 = smul.addr %s28, 128
          %s235 = scalar_lea.hbm %s1, %s234
          %s236 = sshll.u32 %s230, 4
          %s237 = int_to_ptr.vmem [resolvable:$true] %s236
          %242 = dma.hbm_to_vmem [thread:$0]  %s235, 2048, %s237, %s227, 256, 128, 8
        $region28: #{tpu_custom_call.1} parent=19 // pred_fallthru
          _
        // Predicated region
        $region29: #{tpu_custom_call.1} parent=19 // pred_check
          %p243 = pneg %p104
        $region30: #{tpu_custom_call.1} parent=19 // pred_check_branch
          %245 = sbr.rel (%p243) target = $region32
        $region31: #{tpu_custom_call.1} parent=19 // pred_region
          %p246 = scmp.lt.s32.totalorder %s28, 1
          %s247 = scalar_select %p246, %s28, 1
          %s248 = scalar_lea.vmem %s2, %s247
        $region32: #{tpu_custom_call.1} parent=19 // pred_fallthru
          _
        // Predicated region
        $region33: #{tpu_custom_call.1} parent=19 // pred_check
          %p249 = pneg %p130
        $region34: #{tpu_custom_call.1} parent=19 // pred_check_branch
          %251 = sbr.rel (%p249) target = $region36
        $region35: #{tpu_custom_call.1} parent=19 // pred_region
          %s252 = sand.u32 %s20, 1
          %s253 = scalar_lea.sflag [#allocation7], %s252
          %s254 = sand.u32 %s120, 1
          %s255 = smul.addr %s254, 128
          %s256 = scalar_lea.vmem [#allocation8], %s255
          %s257 = smul.u32 16, %s28
          %s259 = ssub.s32 2048, 2048
          %260 = vsyncadd %s253, %s259
          %s261 = smul.addr %s257, 128
          %s262 = scalar_lea.hbm %s3, %s261
          %s263 = sshll.u32 %s256, 4
          %s264 = int_to_ptr.vmem [resolvable:$true] %s263
          %269 = dma.hbm_to_vmem [thread:$0]  %s262, 2048, %s264, %s253, 128, 128, 8
        $region36: #{tpu_custom_call.1} parent=19 // pred_fallthru
          _
      $region20: #{tpu_custom_call.1} parent=5 // pred_fallthru
        _
      %p270 = scmp.le.s32.totalorder 1, %s20
      %p271 = scmp.lt.s32.totalorder %s20, 5
      %p272 = pnand %p270, %p271
      %p273 = pneg %p272
      // Predicated region
      $region37: #{tpu_custom_call.1} parent=5 // pred_check
        _
      $region38: #{tpu_custom_call.1} parent=5 // pred_check_branch
        %275 = sbr.rel (%p272) target = $region40
      $region39: #{tpu_custom_call.1} parent=5 // pred_region
        %s276 = ssub.s32 %s20, 1
        %s277 = sand.u32 %s45, 1
        %s278 = scalar_lea.sflag [#allocation4], %s277
        %s279 = sand.u32 %s45, 1
        %s280 = smul.addr %s279, 8
        %s281 = scalar_lea.vmem [#allocation3], %s280
        // Predicated region
        $region41: #{tpu_custom_call.1} parent=39 // pred_check
          %p282 = pneg %p58
        $region42: #{tpu_custom_call.1} parent=39 // pred_check_branch
          %284 = sbr.rel (%p282) target = $region44
        $region43: #{tpu_custom_call.1} parent=39 // pred_region
          %285 = dma.done %s278, 128
        $region44: #{tpu_custom_call.1} parent=39 // pred_fallthru
          _
        %s286 = sand.u32 %s25, 1
        %s287 = scalar_lea.sflag [#allocation7], %s286
        %s288 = sand.u32 %s71, 1
        %s289 = smul.addr %s288, 128
        %s290 = scalar_lea.vmem [#allocation6], %s289
        // Predicated region
        $region45: #{tpu_custom_call.1} parent=39 // pred_check
          %p291 = pneg %p84
        $region46: #{tpu_custom_call.1} parent=39 // pred_check_branch
          %293 = sbr.rel (%p291) target = $region48
        $region47: #{tpu_custom_call.1} parent=39 // pred_region
          %294 = dma.done %s287, 2048
        $region48: #{tpu_custom_call.1} parent=39 // pred_fallthru
          _
        %s295 = sand.u32 %s25, 1
        %s296 = scalar_lea.sflag [#allocation7], %s295
        %s297 = sand.u32 %s123, 1
        %s298 = smul.addr %s297, 128
        %s299 = scalar_lea.vmem [#allocation8], %s298
        // Predicated region
        $region49: #{tpu_custom_call.1} parent=39 // pred_check
          %p300 = pneg %p136
        $region50: #{tpu_custom_call.1} parent=39 // pred_check_branch
          %302 = sbr.rel (%p300) target = $region52
        $region51: #{tpu_custom_call.1} parent=39 // pred_region
          %303 = dma.done %s296, 2048
        $region52: #{tpu_custom_call.1} parent=39 // pred_fallthru
          _
        %s304 = sand.u32 %s45, 1
        %s305 = scalar_lea.sflag [#allocation4], %s304
        %s306 = sand.u32 %s45, 1
        %s307 = smul.addr %s306, 8
        %s308 = scalar_lea.vmem [#allocation3], %s307
        %p309 = pneg %p58
        %p310 = pneg %p55
        %s311 = sand.u32 %s25, 1
        %s312 = scalar_lea.sflag [#allocation7], %s311
        %s313 = sand.u32 %s71, 1
        %s314 = smul.addr %s313, 128
        %s315 = scalar_lea.vmem [#allocation6], %s314
        %p316 = pneg %p84
        %p317 = pneg %p81
        %p318 = scmp.lt.s32.totalorder %s30, 1
        %s319 = scalar_select %p318, %s30, 1
        %s320 = scalar_lea.vmem %s2, %s319
        %p321 = pneg %p110
        %p322 = pneg %p107
        %s323 = sand.u32 %s25, 1
        %s324 = scalar_lea.sflag [#allocation7], %s323
        %s325 = sand.u32 %s123, 1
        %s326 = smul.addr %s325, 128
        %s327 = scalar_lea.vmem [#allocation8], %s326
        %p328 = pneg %p136
        %p329 = pneg %p133
        %p330 = pneg %p157
        %p331 = pneg %p154
        %p332 = pneg %p183
        %p333 = pneg %p180
        %s334 = sand.u32 %s170, 1
        %s335 = scalar_lea.sflag [#allocation5], %s334
        %s336 = sand.u32 %s170, 1
        %s337 = smul.addr %s336, 8
        %s338 = scalar_lea.vmem [#allocation9], %s337
        %p339 = scmp.lt.s32.totalorder %s30, 1
        %s340 = scalar_select %p339, %s30, 1
        %s341 = scalar_lea.vmem %s2, %s340
        %s342 = smul.u32 16, %s30
        %p343 = scmp.eq.s32.totalorder %s30, 0
        // Predicated region
        $region53: #{tpu_custom_call.1} parent=39 // pred_check
          %p344 = pneg %p343
        $region54: #{tpu_custom_call.1} parent=39 // pred_check_branch
          %346 = sbr.rel (%p344) target = $region56
        $region55: #{tpu_custom_call.1} parent=39 // pred_region
          %347 = vst [vmem:[#allocation2] sm:$0xff] 0.0
        $region56: #{tpu_custom_call.1} parent=39 // pred_fallthru
          _
        %v348 = vld [vmem:[%s290] sm:$0xff]
        %v349 = vld [vmem:[%s290 + $0x8] sm:$0xff]
        %v350 = vld [vmem:[%s290 + $0x10] sm:$0xff]
        %v351 = vld [vmem:[%s290 + $0x18] sm:$0xff]
        %v352 = vld [vmem:[%s290 + $0x20] sm:$0xff]
        %v353 = vld [vmem:[%s290 + $0x28] sm:$0xff]
        %v354 = vld [vmem:[%s290 + $0x30] sm:$0xff]
        %v355 = vld [vmem:[%s290 + $0x38] sm:$0xff]
        %v356 = vld [vmem:[%s290 + $0x40] sm:$0xff]
        %v357 = vld [vmem:[%s290 + $0x48] sm:$0xff]
        %v358 = vld [vmem:[%s290 + $0x50] sm:$0xff]
        %v359 = vld [vmem:[%s290 + $0x58] sm:$0xff]
        %v360 = vld [vmem:[%s290 + $0x60] sm:$0xff]
        %v361 = vld [vmem:[%s290 + $0x68] sm:$0xff]
        %v362 = vld [vmem:[%s290 + $0x70] sm:$0xff]
        %v363 = vld [vmem:[%s290 + $0x78] sm:$0xff]
        %v364 = vld [vmem:[%s341] sm:$0x1]
        %v365 = vld [vmem:[%s299] sm:$0xff]
        %v366 = vld [vmem:[%s299 + $0x8] sm:$0xff]
        %v367 = vld [vmem:[%s299 + $0x10] sm:$0xff]
        %v368 = vld [vmem:[%s299 + $0x18] sm:$0xff]
        %v369 = vld [vmem:[%s299 + $0x20] sm:$0xff]
        %v370 = vld [vmem:[%s299 + $0x28] sm:$0xff]
        %v371 = vld [vmem:[%s299 + $0x30] sm:$0xff]
        %v372 = vld [vmem:[%s299 + $0x38] sm:$0xff]
        %v373 = vld [vmem:[%s299 + $0x40] sm:$0xff]
        %v374 = vld [vmem:[%s299 + $0x48] sm:$0xff]
        %v375 = vld [vmem:[%s299 + $0x50] sm:$0xff]
        %v376 = vld [vmem:[%s299 + $0x58] sm:$0xff]
        %v377 = vld [vmem:[%s299 + $0x60] sm:$0xff]
        %v378 = vld [vmem:[%s299 + $0x68] sm:$0xff]
        %v379 = vld [vmem:[%s299 + $0x70] sm:$0xff]
        %v380 = vld [vmem:[%s299 + $0x78] sm:$0xff]
        %v381 = vld [vmem:[%s281] sm:$0xff]
        %v383 = vlaneseq
        %v384 = vshrl.u32 %v383, 7
        %v385 = vsub.s32 0, %v384
        %v386 = vrot.slane %v364, %v385
        %388 = vmatprep.subr.mxu0 0.0
        %389 = vmatpush1.msra.mxu0 %v363
        %390 = vmatprep.subr.mxu0 0.0
        %391 = vmatpush1.msra.mxu0 %v362
        %392 = vmatprep.subr.mxu0 0.0
        %393 = vmatpush1.msra.mxu0 %v361
        %394 = vmatprep.subr.mxu0 0.0
        %395 = vmatpush1.msra.mxu0 %v360
        %396 = vmatprep.subr.mxu0 0.0
        %397 = vmatpush1.msra.mxu0 %v359
        %398 = vmatprep.subr.mxu0 0.0
        %399 = vmatpush1.msra.mxu0 %v358
        %400 = vmatprep.subr.mxu0 0.0
        %401 = vmatpush1.msra.mxu0 %v357
        %402 = vmatprep.subr.mxu0 0.0
        %403 = vmatpush1.msra.mxu0 %v356
        %404 = vmatprep.subr.mxu0 0.0
        %405 = vmatpush1.msra.mxu0 %v355
        %406 = vmatprep.subr.mxu0 0.0
        %407 = vmatpush1.msra.mxu0 %v354
        %408 = vmatprep.subr.mxu0 0.0
        %409 = vmatpush1.msra.mxu0 %v353
        %410 = vmatprep.subr.mxu0 0.0
        %411 = vmatpush1.msra.mxu0 %v352
        %412 = vmatprep.subr.mxu0 0.0
        %413 = vmatpush1.msra.mxu0 %v351
        %414 = vmatprep.subr.mxu0 0.0
        %415 = vmatpush1.msra.mxu0 %v350
        %416 = vmatprep.subr.mxu0 0.0
        %417 = vmatpush1.msra.mxu0 %v349
        %418 = vmatprep.subr.mxu0 0.0
        %419 = vmatpush1.msra.mxu0 %v348
        %420 = vmatprep.subr.mxu0 0.0
        %421 = vmatpush2.msra.mxu0 0.0
        %422 = vmatprep.subr.mxu0 0.0
        %423 = vmatpush2.msra.mxu0 0.0
        %424 = vmatprep.subr.mxu0 0.0
        %425 = vmatpush2.msra.mxu0 0.0
        %426 = vmatprep.subr.mxu0 0.0
        %427 = vmatpush2.msra.mxu0 0.0
        %428 = vmatprep.subr.mxu0 0.0
        %429 = vmatpush2.msra.mxu0 0.0
        %430 = vmatprep.subr.mxu0 0.0
        %431 = vmatpush2.msra.mxu0 0.0
        %432 = vmatprep.subr.mxu0 0.0
        %433 = vmatpush2.msra.mxu0 0.0
        %434 = vmatprep.subr.mxu0 0.0
        %435 = vmatpush2.msra.mxu0 0.0
        %436 = vmatprep.subr.mxu0 0.0
        %437 = vmatpush2.msra.mxu0 0.0
        %438 = vmatprep.subr.mxu0 0.0
        %439 = vmatpush2.msra.mxu0 0.0
        %440 = vmatprep.subr.mxu0 0.0
        %441 = vmatpush2.msra.mxu0 0.0
        %442 = vmatprep.subr.mxu0 0.0
        %443 = vmatpush2.msra.mxu0 0.0
        %444 = vmatprep.subr.mxu0 0.0
        %445 = vmatpush2.msra.mxu0 0.0
        %446 = vmatprep.subr.mxu0 0.0
        %447 = vmatpush2.msra.mxu0 0.0
        %448 = vmatprep.subr.mxu0 0.0
        %449 = vmatpush2.msra.mxu0 0.0
        %450 = vmatprep.subr.mxu0 0.0
        %451 = vmatpush2.msra.mxu0 0.0
        %452 = vmatprep.mubr.f32.mxu0 0.0
        %453 = vmatmul.mubr.f32.gmra.mxu0 %v381
        %v454 = vpop.f32.mrf.mxu0
        %v455 = vadd.f32 %v386, %v454
        %v456 = vpop.f32.mrf.mxu0
        %457 = vdwg.mxu0
        %v458 = vmul.f32 %v455, 0.5
        %v459 = vmul.f32 %v455, 0.70710677
        %v460 = verf.f32.pop %v459
        %v461 = vadd.f32 %v460, 1.0
        %v462 = vmul.f32 %v458, %v461
        %v463 = vld [vmem:[#allocation2] sm:$0xff]
        %464 = vmatprep.subr.mxu0 0.0
        %465 = vmatpush1.msra.mxu0 %v380
        %466 = vmatprep.subr.mxu0 0.0
        %467 = vmatpush1.msra.mxu0 %v379
        %468 = vmatprep.subr.mxu0 0.0
        %469 = vmatpush1.msra.mxu0 %v378
        %470 = vmatprep.subr.mxu0 0.0
        %471 = vmatpush1.msra.mxu0 %v377
        %472 = vmatprep.subr.mxu0 0.0
        %473 = vmatpush1.msra.mxu0 %v376
        %474 = vmatprep.subr.mxu0 0.0
        %475 = vmatpush1.msra.mxu0 %v375
        %476 = vmatprep.subr.mxu0 0.0
        %477 = vmatpush1.msra.mxu0 %v374
        %478 = vmatprep.subr.mxu0 0.0
        %479 = vmatpush1.msra.mxu0 %v373
        %480 = vmatprep.subr.mxu0 0.0
        %481 = vmatpush1.msra.mxu0 %v372
        %482 = vmatprep.subr.mxu0 0.0
        %483 = vmatpush1.msra.mxu0 %v371
        %484 = vmatprep.subr.mxu0 0.0
        %485 = vmatpush1.msra.mxu0 %v370
        %486 = vmatprep.subr.mxu0 0.0
        %487 = vmatpush1.msra.mxu0 %v369
        %488 = vmatprep.subr.mxu0 0.0
        %489 = vmatpush1.msra.mxu0 %v368
        %490 = vmatprep.subr.mxu0 0.0
        %491 = vmatpush1.msra.mxu0 %v367
        %492 = vmatprep.subr.mxu0 0.0
        %493 = vmatpush1.msra.mxu0 %v366
        %494 = vmatprep.subr.mxu0 0.0
        %495 = vmatpush1.msra.mxu0 %v365
        %496 = vmatprep.subr.mxu0 0.0
        %497 = vmatpush2.msra.mxu0 0.0
        %498 = vmatprep.subr.mxu0 0.0
        %499 = vmatpush2.msra.mxu0 0.0
        %500 = vmatprep.subr.mxu0 0.0
        %501 = vmatpush2.msra.mxu0 0.0
        %502 = vmatprep.subr.mxu0 0.0
        %503 = vmatpush2.msra.mxu0 0.0
        %504 = vmatprep.subr.mxu0 0.0
        %505 = vmatpush2.msra.mxu0 0.0
        %506 = vmatprep.subr.mxu0 0.0
        %507 = vmatpush2.msra.mxu0 0.0
        %508 = vmatprep.subr.mxu0 0.0
        %509 = vmatpush2.msra.mxu0 0.0
        %510 = vmatprep.subr.mxu0 0.0
        %511 = vmatpush2.msra.mxu0 0.0
        %512 = vmatprep.subr.mxu0 0.0
        %513 = vmatpush2.msra.mxu0 0.0
        %514 = vmatprep.subr.mxu0 0.0
        %515 = vmatpush2.msra.mxu0 0.0
        %516 = vmatprep.subr.mxu0 0.0
        %517 = vmatpush2.msra.mxu0 0.0
        %518 = vmatprep.subr.mxu0 0.0
        %519 = vmatpush2.msra.mxu0 0.0
        %520 = vmatprep.subr.mxu0 0.0
        %521 = vmatpush2.msra.mxu0 0.0
        %522 = vmatprep.subr.mxu0 0.0
        %523 = vmatpush2.msra.mxu0 0.0
        %524 = vmatprep.subr.mxu0 0.0
        %525 = vmatpush2.msra.mxu0 0.0
        %526 = vmatprep.subr.mxu0 0.0
        %527 = vmatpush2.msra.mxu0 0.0
        %528 = vmatprep.mubr.f32.mxu0 0.0
        %529 = vmatmul.mubr.f32.gmra.mxu0 %v462
        %v530 = vpop.f32.mrf.mxu0
        %v531 = vadd.f32 0.0, %v530
        %v532 = vpop.f32.mrf.mxu0
        %533 = vdwg.mxu0
        %v534 = vadd.f32 %v463, %v531
        %535 = vst [vmem:[#allocation2] sm:$0xff] %v534
        %p536 = scmp.eq.s32.totalorder %s30, 1
        // Predicated region
        $region57: #{tpu_custom_call.1} parent=39 // pred_check
          %p537 = pneg %p536
        $region58: #{tpu_custom_call.1} parent=39 // pred_check_branch
          %539 = sbr.rel (%p537) target = $region60
        $region59: #{tpu_custom_call.1} parent=39 // pred_region
          %v540 = vld [vmem:[#allocation2] sm:$0xff]
          %v541 = vld [vmem:[%s4] sm:$0x1]
          %v543 = vlaneseq
          %v544 = vshrl.u32 %v543, 7
          %v545 = vsub.s32 0, %v544
          %v546 = vrot.slane %v541, %v545
          %v548 = vadd.f32 %v540, %v546
          %549 = vst [vmem:[%s338] sm:$0xff] %v548
        $region60: #{tpu_custom_call.1} parent=39 // pred_fallthru
          _
        %s550 = sand.u32 %s170, 1
        %s551 = scalar_lea.sflag [#allocation5], %s550
        %s552 = sand.u32 %s170, 1
        %s553 = smul.addr %s552, 8
        %s554 = scalar_lea.vmem [#allocation9], %s553
        // Predicated region
        $region61: #{tpu_custom_call.1} parent=39 // pred_check
          %p555 = pneg %p180
        $region62: #{tpu_custom_call.1} parent=39 // pred_check_branch
          %557 = sbr.rel (%p555) target = $region64
        $region63: #{tpu_custom_call.1} parent=39 // pred_region
          %s559 = ssub.s32 128, 128
          %560 = vsyncadd %s551, %s559
          %s561 = smul.addr %s29, 128
          %s562 = scalar_lea.hbm %s5, %s561
          %s564 = sshll.u32 %s554, 4
          %s565 = int_to_ptr.vmem [resolvable:$true] %s564
          %567 = dma.vmem_to_hbm [thread:$0]  %s565, 128, %s562, %s551
        $region64: #{tpu_custom_call.1} parent=39 // pred_fallthru
          _
      $region40: #{tpu_custom_call.1} parent=5 // pred_fallthru
        _
      %p568 = scmp.le.s32.totalorder 2, %s20
      // Predicated region
      $region65: #{tpu_custom_call.1} parent=5 // pred_check
        %p569 = pneg %p568
      $region66: #{tpu_custom_call.1} parent=5 // pred_check_branch
        %571 = sbr.rel (%p569) target = $region68
      $region67: #{tpu_custom_call.1} parent=5 // pred_region
        %s572 = ssub.s32 %s20, 2
        // Predicated region
        $region69: #{tpu_custom_call.1} parent=67 // pred_check
          %p573 = pneg %p186
        $region70: #{tpu_custom_call.1} parent=67 // pred_check_branch
          %575 = sbr.rel (%p573) target = $region72
        $region71: #{tpu_custom_call.1} parent=67 // pred_region
          %s576 = sand.u32 %s171, 1
          %s577 = scalar_lea.sflag [#allocation5], %s576
          %s578 = sand.u32 %s171, 1
          %s579 = smul.addr %s578, 8
          %s580 = scalar_lea.vmem [#allocation9], %s579
          %581 = dma.done %s577, 128
        $region72: #{tpu_custom_call.1} parent=67 // pred_fallthru
          _
      $region68: #{tpu_custom_call.1} parent=5 // pred_fallthru
        _
    $region6: #{tpu_custom_call.1} parent=1 // loop_footer
      %s24 = sadd.s32 1, %s20
    $region7: #{tpu_custom_call.1} parent=1 // loop_footer_branch
      %19 = sbr.rel target = $region3
    $region8: #{tpu_custom_call.1} parent=1 // loop_exit
      _
    %582 = vsyncpa [#allocation4], 1
    %s583 = scalar_lea.sflag [#allocation4], 1
    %584 = vsyncpa %s583, 1
    %585 = vsyncpa [#allocation7], 1
    %s586 = scalar_lea.sflag [#allocation7], 1
    %587 = vsyncpa %s586, 1
    %588 = vsyncpa [#allocation5], 1
    %s589 = scalar_lea.sflag [#allocation5], 1
    %590 = vsyncpa %s589, 1

</llo_original>
